<compile_context>
chip_gen: v7x
topology: tpu7x:2x2x1
jax: 0.10.0
libtpu: 0.0.40
codegen_flags: <defaults>
</compile_context>

<pallas_src>
import functools

import jax
import jax.numpy as jnp
from jax import lax
from jax.experimental import pallas as pl
from jax.experimental.pallas import tpu as pltpu

HIGH = lax.Precision.HIGHEST


# ---------------------------------------------------------------------------
# 1) PatchDropout (the spec module)
# ---------------------------------------------------------------------------
def _patch_dropout_gather_kernel(idx_ref, x_hbm, out_ref, sems, *,
                                 k_total, n_inflight):
    """Per-batch token gather.

    For batch b, DMA the K kept rows of x (HBM) straight into the (1, K, D)
    VMEM output block, keeping `n_inflight` row-DMAs in flight.
    """
    b = pl.program_id(0)

    def mk(k, slot):
        row = idx_ref[b * k_total + k]          # SMEM scalar read
        return pltpu.make_async_copy(
            x_hbm.at[pl.ds(b, 1), pl.ds(row, 1), :],      # (1, 1, D) HBM src
            out_ref.at[:, pl.ds(k, 1), :],                # (1, 1, D) VMEM dst
            sems.at[slot])

    # Prime the pipeline with the first n_inflight row copies.
    for s in range(n_inflight):
        mk(s, s).start()

    @pl.loop(0, k_total)
    def _(k):
        slot = k % n_inflight
        mk(k, slot).wait()                      # row k has landed

        @pl.when(k + n_inflight < k_total)
        def _():
            mk(k + n_inflight, slot).start()    # refill the slot


def patch_dropout(x, prob, key, *, exclude_first_token=True):
    """Forward pass of PatchDropout (training-mode token dropout).

    x: (B, T, D).  Returns (kept_tokens, full_idx) where kept_tokens matches
    the PyTorch forward for the keep-indices in `full_idx`.
    # TODO(synk): exact torch RNG parity (torch.randn + .topk ordering) is not
    # reproducible in JAX; indices are drawn with jax.random instead.
    """
    assert 0 <= prob < 1.0
    B, T, D = x.shape

    num_tokens = T - 1 if exclude_first_token else T
    keep_prob = 1.0 - prob
    num_keep = max(1, int(num_tokens * keep_prob))

    rand = jax.random.normal(key, (B, num_tokens))
    _, keep_idx = lax.top_k(rand, num_keep)                    # (B, num_keep)
    keep_idx = keep_idx.astype(jnp.int32)

    if exclude_first_token:
        # Column 0 gathers the cls token (index 0 of the full sequence); the
        # remaining columns gather the kept patches (shifted by +1).
        full_idx = jnp.concatenate(
            [jnp.zeros((B, 1), jnp.int32), keep_idx + 1], axis=1)
    else:
        full_idx = keep_idx
    K = full_idx.shape[1]
    n_inflight = min(8, K)

    out = pl.pallas_call(
        functools.partial(_patch_dropout_gather_kernel,
                          k_total=K, n_inflight=n_inflight),
        out_shape=jax.ShapeDtypeStruct((B, K, D), x.dtype),
        grid_spec=pltpu.PrefetchScalarGridSpec(
            num_scalar_prefetch=1,                 # flat (B*K,) idx -> SMEM
            grid=(B,),
            in_specs=[pl.BlockSpec(memory_space=pl.ANY)],   # x stays in HBM
            out_specs=pl.BlockSpec((1, K, D), lambda b, idx: (b, 0, 0)),
            scratch_shapes=[pltpu.SemaphoreType.DMA((n_inflight,))],
        ),
        compiler_params=pltpu.CompilerParams(
            dimension_semantics=("parallel",)),
    )(full_idx.reshape(-1), x)

    return out, full_idx


# ---------------------------------------------------------------------------
# 2) Uni3D point Encoder kernel (perf-revised)
# ---------------------------------------------------------------------------
def _encoder_kernel(x_ref,
                    w1_ref, t1_ref,
                    w2_ref, b2_ref,
                    w3g_ref, w3l_ref, t2_ref,
                    w4_ref, b4_ref,
                    out_ref, *, tg, n, cp):
    m = tg * n
    # Matmul operands in bf16 (MXU fast path, halved weight/operand traffic);
    # accumulation and all elementwise work in f32 (v5e VPU has no bf16).
    x = x_ref[...].astype(jnp.bfloat16)                         # (M, 6)

    # first_conv: Conv1d(6,128,1)+BN+ReLU (bias/BN folded) -> Conv1d(128,256,1)
    h1 = jnp.dot(x, w1_ref[...],
                 preferred_element_type=jnp.float32) + t1_ref[...]
    h1 = jnp.maximum(h1, 0.0)                                   # (M, 128) f32
    f = jnp.dot(h1.astype(jnp.bfloat16), w2_ref[...],
                preferred_element_type=jnp.float32) + b2_ref[...]   # (M, 256)

    # per-group global max-pool over the N points of each group
    fg = jnp.max(f.reshape(tg, n, 256), axis=1)                 # (TG, 256)

    # second_conv with w3 split into [global | local] halves:
    #   concat([bcast(fg), f]) @ w3 == bcast(fg @ w3_global) + f @ w3_local
    glob = jnp.dot(fg.astype(jnp.bfloat16), w3g_ref[...],
                   preferred_element_type=jnp.float32)          # (TG, 512)
    loc = jnp.dot(f.astype(jnp.bfloat16), w3l_ref[...],
                  preferred_element_type=jnp.float32) + t2_ref[...]  # (M, 512)
    h2 = jnp.maximum(loc.reshape(tg, n, 512) + glob[:, None, :], 0.0)

    o = jnp.dot(h2.reshape(m, 512).astype(jnp.bfloat16), w4_ref[...],
                preferred_element_type=jnp.float32) + b4_ref[...]    # (M, Cp)

    # final per-group max-pool; (TG, Cp) is a lane-dense (8,128)-aligned store
    out_ref[...] = jnp.max(o.reshape(tg, n, cp), axis=1)


def encoder_forward(point_groups, params, *, tg=None):
    """point_groups: (B, G, N, 6) float32 -> (B, G, C) float32."""
    B, G, N, six = point_groups.shape
    assert six == 6
    # N multiple of 8 keeps the (M,C)<->(tg,N,C) reshapes sublane-pure views.
    assert N % 8 == 0, "points-per-group N must be a multiple of 8"
    BG = B * G
    C = params["w4"].shape[1]
    Cp = ((C + 127) // 128) * 128          # pad last conv to lane-dense width

    # --- fold conv bias + eval-mode BN into the weights (offline) ---
    w1f = params["w1"] * params["s1"]                        # (6, 128)
    t1f = params["b1"] * params["s1"] + params["t1"]         # (1, 128)
    w3f = params["w3"] * params["s2"]                        # (512, 512)
    t2f = params["b3"] * params["s2"] + params["t2"]         # (1, 512)
    w3g, w3l = w3f[:256], w3f[256:]                          # global / local
    w4p = jnp.zeros((512, Cp), jnp.float32).at[:, :C].set(params["w4"])
    b4p = jnp.zeros((1, Cp), jnp.float32).at[:, :C].set(params["b4"])

    # bf16 dot operands (explicit), biases stay f32
    w1b = w1f.astype(jnp.bfloat16)
    w2b = params["w2"].astype(jnp.bfloat16)
    w3gb = w3g.astype(jnp.bfloat16)
    w3lb = w3l.astype(jnp.bfloat16)
    w4b = w4p.astype(jnp.bfloat16)

    # --- pick TG: target M = tg*N ~ 1024 rows/step, keep >= 2 grid steps,
    #     prefer an even number of steps (v7x has 2 TensorCores) ---
    if tg is None:
        target = max(1, 1024 // N)
        if BG >= 2:
            target = min(target, BG // 2)
        divs = [d for d in range(1, BG + 1) if BG % d == 0 and d <= target]
        best = max(divs)
        even = [d for d in divs if (BG // d) % 2 == 0]
        tg = max(even) if (even and 2 * max(even) >= best) else best
    assert BG % tg == 0
    M = tg * N

    # points pre-flattened so the per-step block is a contiguous (M, 6) slab.
    # (channel pad 6->8 deliberately skipped: first conv <1% of FLOPs.)
    x2 = point_groups.reshape(BG * N, 6)

    const = lambda i: (0, 0)   # weights: same block every step -> DMA'd once
    in_specs = [
        pl.BlockSpec((M, 6), lambda i: (i, 0)),
        pl.BlockSpec((6, 128), const),     # K=6 uses the full-array-dim rule
        pl.BlockSpec((1, 128), const),
        pl.BlockSpec((128, 256), const),
        pl.BlockSpec((1, 256), const),
        pl.BlockSpec((256, 512), const),
        pl.BlockSpec((256, 512), const),
        pl.BlockSpec((1, 512), const),
        pl.BlockSpec((512, Cp), const),
        pl.BlockSpec((1, Cp), const),
    ]
    out_specs = pl.BlockSpec((tg, Cp), lambda i: (i, 0))

    flops = (2 * BG * N * (6 * 128 + 128 * 256 + 256 * 512 + 512 * Cp)
             + 2 * BG * 256 * 512)
    operands = (x2, w1b, t1f, w2b, params["b2"], w3gb, w3lb, t2f, w4b, b4p)
    bytes_accessed = sum(int(a.size) * a.dtype.itemsize for a in operands) \
        + BG * Cp * 4

    out = pl.pallas_call(
        functools.partial(_encoder_kernel, tg=tg, n=N, cp=Cp),
        out_shape=jax.ShapeDtypeStruct((BG, Cp), jnp.float32),
        grid_spec=pltpu.PrefetchScalarGridSpec(
            num_scalar_prefetch=0,
            grid=(BG // tg,),
            in_specs=in_specs,
            out_specs=out_specs,
        ),
        compiler_params=pltpu.CompilerParams(
            dimension_semantics=("parallel",),
            vmem_limit_bytes=32 * 1024 * 1024),
        cost_estimate=pl.CostEstimate(flops=flops, transcendentals=0,
                                      bytes_accessed=bytes_accessed),
    )(*operands)

    return out[:, :C].reshape(B, G, C)


def ref_forward(point_groups, params):
    """Pure-JAX reference mirroring the PyTorch Encoder forward (eval-mode BN)."""
    B, G, N, _ = point_groups.shape
    x = point_groups.reshape(B * G, N, 6)
    h1 = jnp.dot(x, params["w1"], precision=HIGH) + params["b1"]
    h1 = jnp.maximum(h1 * params["s1"] + params["t1"], 0.0)
    f = jnp.dot(h1, params["w2"], precision=HIGH) + params["b2"]
    fg = jnp.max(f, axis=1, keepdims=True)
    feat = jnp.concatenate([jnp.broadcast_to(fg, f.shape), f], axis=-1)
    h2 = jnp.dot(feat, params["w3"], precision=HIGH) + params["b3"]
    h2 = jnp.maximum(h2 * params["s2"] + params["t2"], 0.0)
    o = jnp.dot(h2, params["w4"], precision=HIGH) + params["b4"]
    return jnp.max(o, axis=1).reshape(B, G, -1)


def make_params(key, encoder_channel):
    """Deterministic synthetic parameters with the module's shapes.

    Conv1d(k=1) weights (Cout, Cin, 1) are stored transposed as (Cin, Cout).
    BatchNorm (eval) is folded into scale s = gamma/sqrt(var+eps) and
    bias t = beta - mean*s.
    """
    ks = jax.random.split(key, 16)
    eps = 1e-5

    def conv_w(k, cin, cout, scale=0.1):
        return scale * jax.random.normal(k, (cin, cout), jnp.float32)

    def vec(k, c, scale=0.1):
        return scale * jax.random.normal(k, (1, c), jnp.float32)

    # first_conv
    w1, b1 = conv_w(ks[0], 6, 128), vec(ks[1], 128)
    g1, be1 = 1.0 + vec(ks[2], 128), vec(ks[3], 128)
    m1, v1 = vec(ks[4], 128), 1.0 + 0.1 * jnp.abs(jax.random.normal(ks[5], (1, 128)))
    s1 = g1 / jnp.sqrt(v1 + eps)
    t1 = be1 - m1 * s1
    w2, b2 = conv_w(ks[6], 128, 256), vec(ks[7], 256)

    # second_conv
    w3, b3 = conv_w(ks[8], 512, 512, scale=0.05), vec(ks[9], 512)
    g2, be2 = 1.0 + vec(ks[10], 512), vec(ks[11], 512)
    m2, v2 = vec(ks[12], 512), 1.0 + 0.1 * jnp.abs(jax.random.normal(ks[13], (1, 512)))
    s2 = g2 / jnp.sqrt(v2 + eps)
    t2 = be2 - m2 * s2
    w4, b4 = conv_w(ks[14], 512, encoder_channel, scale=0.05), vec(ks[15], encoder_channel)

    return dict(w1=w1, b1=b1, s1=s1, t1=t1, w2=w2, b2=b2,
                w3=w3, b3=b3, s2=s2, t2=t2, w4=w4, b4=b4)


if __name__ == "__main__":
    key = jax.random.PRNGKey(0)
    k_tok, k_drop, k_pts, k_par = jax.random.split(key, 4)

    # --- PatchDropout (the spec module): B=2, 1 cls + 16 patches, D=128 ---
    B, T, D, PROB = 2, 17, 128, 0.5
    x_tokens = jax.random.normal(k_tok, (B, T, D), jnp.float32)
    out_pd, full_idx = patch_dropout(x_tokens, PROB, k_drop,
                                     exclude_first_token=True)
    out_pd = jax.block_until_ready(out_pd)
    ref_pd = jnp.take_along_axis(x_tokens, full_idx[:, :, None], axis=1)
    num_keep = max(1, int((T - 1) * (1.0 - PROB)))
    assert out_pd.shape == (B, 1 + num_keep, D)
    assert jnp.allclose(out_pd, ref_pd), "PatchDropout mismatch vs reference"
    # cls token must be preserved in column 0
    assert jnp.allclose(out_pd[:, 0], x_tokens[:, 0]), "cls token not preserved"

    # --- Uni3D point Encoder (perf-revised kernel) ---
    BE, G, N, ENCODER_CHANNEL = 2, 32, 32, 64
    point_groups = jax.random.normal(k_pts, (BE, G, N, 6), jnp.float32)
    params = make_params(k_par, ENCODER_CHANNEL)

    out_enc = jax.block_until_ready(encoder_forward(point_groups, params))
    ref_enc = jax.block_until_ready(ref_forward(point_groups, params))
    assert out_enc.shape == (BE, G, ENCODER_CHANNEL)
    # explicit bf16 MXU operands vs f32 HIGHEST reference -> loosened tol
    assert jnp.allclose(out_enc, ref_enc, rtol=3e-2, atol=3e-2), \
        "Encoder mismatch vs reference"

    print("KERNEL_OK")
</pallas_src>

<mosaic_0001>
module attributes {stable_mosaic.version = 11 : i64} {
  func.func @_patch_dropout_gather_kernel(%arg0: i32, %arg1: memref<18xi32, #tpu.memory_space<smem>>, %arg2: memref<2x17x128xf32, #tpu.memory_space<any>>, %arg3: memref<1x9x128xf32, #tpu.memory_space<vmem>>, %arg4: memref<8x!tpu.dma_semaphore, #tpu.memory_space<semaphore_mem>>) attributes {dimension_semantics = [#tpu.dimension_semantics<parallel>], iteration_bounds = array<i64: 2>, scalar_prefetch = 1 : i64, scratch_operands = 1 : i64, tpu.core_type = #tpu.core_type<tc>, window_params = [{}, {transform_indices = @transform_1, window_bounds = array<i64: 1, 9, 128>}]} {
    %c9_i32 = arith.constant 9 : i32
    %0 = arith.muli %arg0, %c9_i32 : i32
    %c0_i32 = arith.constant 0 : i32
    %1 = arith.addi %0, %c0_i32 : i32
    %2 = arith.index_cast %1 : i32 to index
    %3 = memref.load %arg1[%2] : memref<18xi32, #tpu.memory_space<smem>>
    %c0_i32_0 = arith.constant 0 : i32
    %c0_i32_1 = arith.constant 0 : i32
    %4 = tpu.memref_slice %arg2[%arg0, %3, %c0_i32_1] : memref<2x17x128xf32, #tpu.memory_space<any>> -> memref<1x1x128xf32, #tpu.memory_space<any>>
    %c0_i32_2 = arith.constant 0 : i32
    %c0_i32_3 = arith.constant 0 : i32
    %c0_i32_4 = arith.constant 0 : i32
    %5 = tpu.memref_slice %arg3[%c0_i32_2, %c0_i32_3, %c0_i32_4] : memref<1x9x128xf32, #tpu.memory_space<vmem>> -> memref<1x1x128xf32, #tpu.memory_space<vmem>>
    %6 = tpu.memref_slice %arg4[%c0_i32_0] : memref<8x!tpu.dma_semaphore, #tpu.memory_space<semaphore_mem>> -> memref<1x!tpu.dma_semaphore, #tpu.memory_space<semaphore_mem>>
    %7 = tpu.memref_squeeze %6 : memref<1x!tpu.dma_semaphore, #tpu.memory_space<semaphore_mem>> -> memref<!tpu.dma_semaphore, #tpu.memory_space<semaphore_mem>>
    tpu.enqueue_dma source(%4 : memref<1x1x128xf32, #tpu.memory_space<any>>) target(%5 : memref<1x1x128xf32, #tpu.memory_space<vmem>>) target_semaphore(%7 : memref<!tpu.dma_semaphore, #tpu.memory_space<semaphore_mem>>)
    %c9_i32_5 = arith.constant 9 : i32
    %8 = arith.muli %arg0, %c9_i32_5 : i32
    %c1_i32 = arith.constant 1 : i32
    %9 = arith.addi %8, %c1_i32 : i32
    %10 = arith.index_cast %9 : i32 to index
    %11 = memref.load %arg1[%10] : memref<18xi32, #tpu.memory_space<smem>>
    %c1_i32_6 = arith.constant 1 : i32
    %c0_i32_7 = arith.constant 0 : i32
    %12 = tpu.memref_slice %arg2[%arg0, %11, %c0_i32_7] : memref<2x17x128xf32, #tpu.memory_space<any>> -> memref<1x1x128xf32, #tpu.memory_space<any>>
    %c0_i32_8 = arith.constant 0 : i32
    %c1_i32_9 = arith.constant 1 : i32
    %c0_i32_10 = arith.constant 0 : i32
    %13 = tpu.memref_slice %arg3[%c0_i32_8, %c1_i32_9, %c0_i32_10] : memref<1x9x128xf32, #tpu.memory_space<vmem>> -> memref<1x1x128xf32, #tpu.memory_space<vmem>>
    %14 = tpu.memref_slice %arg4[%c1_i32_6] : memref<8x!tpu.dma_semaphore, #tpu.memory_space<semaphore_mem>> -> memref<1x!tpu.dma_semaphore, #tpu.memory_space<semaphore_mem>>
    %15 = tpu.memref_squeeze %14 : memref<1x!tpu.dma_semaphore, #tpu.memory_space<semaphore_mem>> -> memref<!tpu.dma_semaphore, #tpu.memory_space<semaphore_mem>>
    tpu.enqueue_dma source(%12 : memref<1x1x128xf32, #tpu.memory_space<any>>) target(%13 : memref<1x1x128xf32, #tpu.memory_space<vmem>>) target_semaphore(%15 : memref<!tpu.dma_semaphore, #tpu.memory_space<semaphore_mem>>)
    %c9_i32_11 = arith.constant 9 : i32
    %16 = arith.muli %arg0, %c9_i32_11 : i32
    %c2_i32 = arith.constant 2 : i32
    %17 = arith.addi %16, %c2_i32 : i32
    %18 = arith.index_cast %17 : i32 to index
    %19 = memref.load %arg1[%18] : memref<18xi32, #tpu.memory_space<smem>>
    %c2_i32_12 = arith.constant 2 : i32
    %c0_i32_13 = arith.constant 0 : i32
    %20 = tpu.memref_slice %arg2[%arg0, %19, %c0_i32_13] : memref<2x17x128xf32, #tpu.memory_space<any>> -> memref<1x1x128xf32, #tpu.memory_space<any>>
    %c0_i32_14 = arith.constant 0 : i32
    %c2_i32_15 = arith.constant 2 : i32
    %c0_i32_16 = arith.constant 0 : i32
    %21 = tpu.memref_slice %arg3[%c0_i32_14, %c2_i32_15, %c0_i32_16] : memref<1x9x128xf32, #tpu.memory_space<vmem>> -> memref<1x1x128xf32, #tpu.memory_space<vmem>>
    %22 = tpu.memref_slice %arg4[%c2_i32_12] : memref<8x!tpu.dma_semaphore, #tpu.memory_space<semaphore_mem>> -> memref<1x!tpu.dma_semaphore, #tpu.memory_space<semaphore_mem>>
    %23 = tpu.memref_squeeze %22 : memref<1x!tpu.dma_semaphore, #tpu.memory_space<semaphore_mem>> -> memref<!tpu.dma_semaphore, #tpu.memory_space<semaphore_mem>>
    tpu.enqueue_dma source(%20 : memref<1x1x128xf32, #tpu.memory_space<any>>) target(%21 : memref<1x1x128xf32, #tpu.memory_space<vmem>>) target_semaphore(%23 : memref<!tpu.dma_semaphore, #tpu.memory_space<semaphore_mem>>)
    %c9_i32_17 = arith.constant 9 : i32
    %24 = arith.muli %arg0, %c9_i32_17 : i32
    %c3_i32 = arith.constant 3 : i32
    %25 = arith.addi %24, %c3_i32 : i32
    %26 = arith.index_cast %25 : i32 to index
    %27 = memref.load %arg1[%26] : memref<18xi32, #tpu.memory_space<smem>>
    %c3_i32_18 = arith.constant 3 : i32
    %c0_i32_19 = arith.constant 0 : i32
    %28 = tpu.memref_slice %arg2[%arg0, %27, %c0_i32_19] : memref<2x17x128xf32, #tpu.memory_space<any>> -> memref<1x1x128xf32, #tpu.memory_space<any>>
    %c0_i32_20 = arith.constant 0 : i32
    %c3_i32_21 = arith.constant 3 : i32
    %c0_i32_22 = arith.constant 0 : i32
    %29 = tpu.memref_slice %arg3[%c0_i32_20, %c3_i32_21, %c0_i32_22] : memref<1x9x128xf32, #tpu.memory_space<vmem>> -> memref<1x1x128xf32, #tpu.memory_space<vmem>>
    %30 = tpu.memref_slice %arg4[%c3_i32_18] : memref<8x!tpu.dma_semaphore, #tpu.memory_space<semaphore_mem>> -> memref<1x!tpu.dma_semaphore, #tpu.memory_space<semaphore_mem>>
    %31 = tpu.memref_squeeze %30 : memref<1x!tpu.dma_semaphore, #tpu.memory_space<semaphore_mem>> -> memref<!tpu.dma_semaphore, #tpu.memory_space<semaphore_mem>>
    tpu.enqueue_dma source(%28 : memref<1x1x128xf32, #tpu.memory_space<any>>) target(%29 : memref<1x1x128xf32, #tpu.memory_space<vmem>>) target_semaphore(%31 : memref<!tpu.dma_semaphore, #tpu.memory_space<semaphore_mem>>)
    %c9_i32_23 = arith.constant 9 : i32
    %32 = arith.muli %arg0, %c9_i32_23 : i32
    %c4_i32 = arith.constant 4 : i32
    %33 = arith.addi %32, %c4_i32 : i32
    %34 = arith.index_cast %33 : i32 to index
    %35 = memref.load %arg1[%34] : memref<18xi32, #tpu.memory_space<smem>>
    %c4_i32_24 = arith.constant 4 : i32
    %c0_i32_25 = arith.constant 0 : i32
    %36 = tpu.memref_slice %arg2[%arg0, %35, %c0_i32_25] : memref<2x17x128xf32, #tpu.memory_space<any>> -> memref<1x1x128xf32, #tpu.memory_space<any>>
    %c0_i32_26 = arith.constant 0 : i32
    %c4_i32_27 = arith.constant 4 : i32
    %c0_i32_28 = arith.constant 0 : i32
    %37 = tpu.memref_slice %arg3[%c0_i32_26, %c4_i32_27, %c0_i32_28] : memref<1x9x128xf32, #tpu.memory_space<vmem>> -> memref<1x1x128xf32, #tpu.memory_space<vmem>>
    %38 = tpu.memref_slice %arg4[%c4_i32_24] : memref<8x!tpu.dma_semaphore, #tpu.memory_space<semaphore_mem>> -> memref<1x!tpu.dma_semaphore, #tpu.memory_space<semaphore_mem>>
    %39 = tpu.memref_squeeze %38 : memref<1x!tpu.dma_semaphore, #tpu.memory_space<semaphore_mem>> -> memref<!tpu.dma_semaphore, #tpu.memory_space<semaphore_mem>>
    tpu.enqueue_dma source(%36 : memref<1x1x128xf32, #tpu.memory_space<any>>) target(%37 : memref<1x1x128xf32, #tpu.memory_space<vmem>>) target_semaphore(%39 : memref<!tpu.dma_semaphore, #tpu.memory_space<semaphore_mem>>)
    %c9_i32_29 = arith.constant 9 : i32
    %40 = arith.muli %arg0, %c9_i32_29 : i32
    %c5_i32 = arith.constant 5 : i32
    %41 = arith.addi %40, %c5_i32 : i32
    %42 = arith.index_cast %41 : i32 to index
    %43 = memref.load %arg1[%42] : memref<18xi32, #tpu.memory_space<smem>>
    %c5_i32_30 = arith.constant 5 : i32
    %c0_i32_31 = arith.constant 0 : i32
    %44 = tpu.memref_slice %arg2[%arg0, %43, %c0_i32_31] : memref<2x17x128xf32, #tpu.memory_space<any>> -> memref<1x1x128xf32, #tpu.memory_space<any>>
    %c0_i32_32 = arith.constant 0 : i32
    %c5_i32_33 = arith.constant 5 : i32
    %c0_i32_34 = arith.constant 0 : i32
    %45 = tpu.memref_slice %arg3[%c0_i32_32, %c5_i32_33, %c0_i32_34] : memref<1x9x128xf32, #tpu.memory_space<vmem>> -> memref<1x1x128xf32, #tpu.memory_space<vmem>>
    %46 = tpu.memref_slice %arg4[%c5_i32_30] : memref<8x!tpu.dma_semaphore, #tpu.memory_space<semaphore_mem>> -> memref<1x!tpu.dma_semaphore, #tpu.memory_space<semaphore_mem>>
    %47 = tpu.memref_squeeze %46 : memref<1x!tpu.dma_semaphore, #tpu.memory_space<semaphore_mem>> -> memref<!tpu.dma_semaphore, #tpu.memory_space<semaphore_mem>>
    tpu.enqueue_dma source(%44 : memref<1x1x128xf32, #tpu.memory_space<any>>) target(%45 : memref<1x1x128xf32, #tpu.memory_space<vmem>>) target_semaphore(%47 : memref<!tpu.dma_semaphore, #tpu.memory_space<semaphore_mem>>)
    %c9_i32_35 = arith.constant 9 : i32
    %48 = arith.muli %arg0, %c9_i32_35 : i32
    %c6_i32 = arith.constant 6 : i32
    %49 = arith.addi %48, %c6_i32 : i32
    %50 = arith.index_cast %49 : i32 to index
    %51 = memref.load %arg1[%50] : memref<18xi32, #tpu.memory_space<smem>>
    %c6_i32_36 = arith.constant 6 : i32
    %c0_i32_37 = arith.constant 0 : i32
    %52 = tpu.memref_slice %arg2[%arg0, %51, %c0_i32_37] : memref<2x17x128xf32, #tpu.memory_space<any>> -> memref<1x1x128xf32, #tpu.memory_space<any>>
    %c0_i32_38 = arith.constant 0 : i32
    %c6_i32_39 = arith.constant 6 : i32
    %c0_i32_40 = arith.constant 0 : i32
    %53 = tpu.memref_slice %arg3[%c0_i32_38, %c6_i32_39, %c0_i32_40] : memref<1x9x128xf32, #tpu.memory_space<vmem>> -> memref<1x1x128xf32, #tpu.memory_space<vmem>>
    %54 = tpu.memref_slice %arg4[%c6_i32_36] : memref<8x!tpu.dma_semaphore, #tpu.memory_space<semaphore_mem>> -> memref<1x!tpu.dma_semaphore, #tpu.memory_space<semaphore_mem>>
    %55 = tpu.memref_squeeze %54 : memref<1x!tpu.dma_semaphore, #tpu.memory_space<semaphore_mem>> -> memref<!tpu.dma_semaphore, #tpu.memory_space<semaphore_mem>>
    tpu.enqueue_dma source(%52 : memref<1x1x128xf32, #tpu.memory_space<any>>) target(%53 : memref<1x1x128xf32, #tpu.memory_space<vmem>>) target_semaphore(%55 : memref<!tpu.dma_semaphore, #tpu.memory_space<semaphore_mem>>)
    %c9_i32_41 = arith.constant 9 : i32
    %56 = arith.muli %arg0, %c9_i32_41 : i32
    %c7_i32 = arith.constant 7 : i32
    %57 = arith.addi %56, %c7_i32 : i32
    %58 = arith.index_cast %57 : i32 to index
    %59 = memref.load %arg1[%58] : memref<18xi32, #tpu.memory_space<smem>>
    %c7_i32_42 = arith.constant 7 : i32
    %c0_i32_43 = arith.constant 0 : i32
    %60 = tpu.memref_slice %arg2[%arg0, %59, %c0_i32_43] : memref<2x17x128xf32, #tpu.memory_space<any>> -> memref<1x1x128xf32, #tpu.memory_space<any>>
    %c0_i32_44 = arith.constant 0 : i32
    %c7_i32_45 = arith.constant 7 : i32
    %c0_i32_46 = arith.constant 0 : i32
    %61 = tpu.memref_slice %arg3[%c0_i32_44, %c7_i32_45, %c0_i32_46] : memref<1x9x128xf32, #tpu.memory_space<vmem>> -> memref<1x1x128xf32, #tpu.memory_space<vmem>>
    %62 = tpu.memref_slice %arg4[%c7_i32_42] : memref<8x!tpu.dma_semaphore, #tpu.memory_space<semaphore_mem>> -> memref<1x!tpu.dma_semaphore, #tpu.memory_space<semaphore_mem>>
    %63 = tpu.memref_squeeze %62 : memref<1x!tpu.dma_semaphore, #tpu.memory_space<semaphore_mem>> -> memref<!tpu.dma_semaphore, #tpu.memory_space<semaphore_mem>>
    tpu.enqueue_dma source(%60 : memref<1x1x128xf32, #tpu.memory_space<any>>) target(%61 : memref<1x1x128xf32, #tpu.memory_space<vmem>>) target_semaphore(%63 : memref<!tpu.dma_semaphore, #tpu.memory_space<semaphore_mem>>)
    %c0_i32_47 = arith.constant 0 : i32
    %c9_i32_48 = arith.constant 9 : i32
    %64 = arith.addi %c0_i32_47, %c9_i32_48 : i32
    %c1_i32_49 = arith.constant 1 : i32
    scf.for %arg5 = %c0_i32_47 to %64 step %c1_i32_49  : i32 {
      %c1_i32_51 = arith.constant 1 : i32
      %65 = arith.muli %arg5, %c1_i32_51 : i32
      %c0_i32_52 = arith.constant 0 : i32
      %66 = arith.addi %c0_i32_52, %65 : i32
      %c8_i32 = arith.constant 8 : i32
      %c0_i32_53 = arith.constant 0 : i32
      %67 = arith.cmpi eq, %c8_i32, %c0_i32_53 : i32
      %c1_i32_54 = arith.constant 1 : i32
      %68 = arith.select %67, %c1_i32_54, %c8_i32 : i32
      %69 = arith.remsi %66, %68 : i32
      %c0_i32_55 = arith.constant 0 : i32
      %70 = arith.cmpi ne, %69, %c0_i32_55 : i32
      %c0_i32_56 = arith.constant 0 : i32
      %71 = arith.cmpi slt, %69, %c0_i32_56 : i32
      %c0_i32_57 = arith.constant 0 : i32
      %72 = arith.cmpi slt, %68, %c0_i32_57 : i32
      %73 = arith.xori %71, %72 : i1
      %74 = arith.andi %73, %70 : i1
      %75 = arith.addi %69, %68 : i32
      %76 = arith.select %74, %75, %69 : i32
      %c9_i32_58 = arith.constant 9 : i32
      %77 = arith.muli %arg0, %c9_i32_58 : i32
      %78 = arith.addi %77, %66 : i32
      %79 = arith.index_cast %78 : i32 to index
      %80 = memref.load %arg1[%79] : memref<18xi32, #tpu.memory_space<smem>>
      %c0_i32_59 = arith.constant 0 : i32
      %81 = tpu.memref_slice %arg2[%arg0, %80, %c0_i32_59] : memref<2x17x128xf32, #tpu.memory_space<any>> -> memref<1x1x128xf32, #tpu.memory_space<any>>
      %c0_i32_60 = arith.constant 0 : i32
      %c0_i32_61 = arith.constant 0 : i32
      %82 = tpu.memref_slice %arg3[%c0_i32_60, %66, %c0_i32_61] : memref<1x9x128xf32, #tpu.memory_space<vmem>> -> memref<1x1x128xf32, #tpu.memory_space<vmem>>
      %83 = tpu.memref_slice %arg4[%76] : memref<8x!tpu.dma_semaphore, #tpu.memory_space<semaphore_mem>> -> memref<1x!tpu.dma_semaphore, #tpu.memory_space<semaphore_mem>>
      %84 = tpu.memref_squeeze %83 : memref<1x!tpu.dma_semaphore, #tpu.memory_space<semaphore_mem>> -> memref<!tpu.dma_semaphore, #tpu.memory_space<semaphore_mem>>
      tpu.wait_dma2 semaphore(%84 : memref<!tpu.dma_semaphore, #tpu.memory_space<semaphore_mem>>) src(%81 : memref<1x1x128xf32, #tpu.memory_space<any>>) dst(%82 : memref<1x1x128xf32, #tpu.memory_space<vmem>>)
      %c8_i32_62 = arith.constant 8 : i32
      %85 = arith.addi %66, %c8_i32_62 : i32
      %c9_i32_63 = arith.constant 9 : i32
      %86 = arith.cmpi slt, %85, %c9_i32_63 : i32
      %87 = arith.extui %86 : i1 to i32
      %c0_i32_64 = arith.constant 0 : i32
      %88 = arith.cmpi ne, %87, %c0_i32_64 : i32
      scf.if %88 {
        %c8_i32_65 = arith.constant 8 : i32
        %89 = arith.addi %66, %c8_i32_65 : i32
        %c9_i32_66 = arith.constant 9 : i32
        %90 = arith.muli %arg0, %c9_i32_66 : i32
        %91 = arith.addi %90, %89 : i32
        %92 = arith.index_cast %91 : i32 to index
        %93 = memref.load %arg1[%92] : memref<18xi32, #tpu.memory_space<smem>>
        %c0_i32_67 = arith.constant 0 : i32
        %94 = tpu.memref_slice %arg2[%arg0, %93, %c0_i32_67] : memref<2x17x128xf32, #tpu.memory_space<any>> -> memref<1x1x128xf32, #tpu.memory_space<any>>
        %c0_i32_68 = arith.constant 0 : i32
        %c0_i32_69 = arith.constant 0 : i32
        %95 = tpu.memref_slice %arg3[%c0_i32_68, %89, %c0_i32_69] : memref<1x9x128xf32, #tpu.memory_space<vmem>> -> memref<1x1x128xf32, #tpu.memory_space<vmem>>
        %96 = tpu.memref_slice %arg4[%76] : memref<8x!tpu.dma_semaphore, #tpu.memory_space<semaphore_mem>> -> memref<1x!tpu.dma_semaphore, #tpu.memory_space<semaphore_mem>>
        %97 = tpu.memref_squeeze %96 : memref<1x!tpu.dma_semaphore, #tpu.memory_space<semaphore_mem>> -> memref<!tpu.dma_semaphore, #tpu.memory_space<semaphore_mem>>
        tpu.enqueue_dma source(%94 : memref<1x1x128xf32, #tpu.memory_space<any>>) target(%95 : memref<1x1x128xf32, #tpu.memory_space<vmem>>) target_semaphore(%97 : memref<!tpu.dma_semaphore, #tpu.memory_space<semaphore_mem>>)
      } else {
      }
    }
    %c9_i32_50 = arith.constant 9 : i32
    return
  }
  func.func @transform_1(%arg0: i32, %arg1: memref<18xi32, #tpu.memory_space<smem>>) -> (i32, i32, i32) {
    %c0_i32 = arith.constant 0 : i32
    %c0_i32_0 = arith.constant 0 : i32
    %c0_i32_1 = arith.constant 0 : i32
    return %arg0, %c0_i32, %c0_i32_0 : i32, i32, i32
  }
}

</mosaic_0001>

<llo_original>
// kernel: tpu_custom_call.1
$region0: #{tpu_custom_call.1}
  #allocation0 [shape = 'u32[]', space=smem, size = 0x4, offset = 0x4, fixed_abs, tag = 'smem constant byte address 0x4 - core index']
  #allocation1 [shape = 'u32[144,128]{1,0:T(1,128)}', space=vmem, size = 0x12000, scoped, tag = 'internal scratch']
  #allocation2 [shape = 's32[8]{0}', space=sflag, size = 0x20, scoped, tag = 'scratch operand']
  #allocation3 [shape = 's32[1]{0}', space=sflag, size = 0x4, scoped, tag = 'scoped memory for tpu_custom_call.1']
  #allocation4 [shape = 'u8[512]{0}', space=smem, size = 0x200, scoped, tag = 'prefetched SMEM operand 0']
  #allocation5 [shape = 's32[]', space=sflag, size = 0x4, offset = 0, fixed_abs, tag = 'sflag constant byte address 0x0 - dummy sync flag']
  #allocation6 [shape = 's32[]', space=sflag, size = 0x4, offset = 0, fixed_abs, tag = 'sflag constant byte address 0x0 - dummy sync flag']
  #allocation7 [shape = 's32[]', space=sflag, size = 0x4, offset = 0, fixed_abs, tag = 'sflag constant byte address 0x0 - dummy sync flag']
  #allocation8 [shape = 's32[]', space=sflag, size = 0x4, offset = 0, fixed_abs, tag = 'sflag constant byte address 0x0 - dummy sync flag']
  #allocation9 [shape = 's32[]', space=sflag, size = 0x4, offset = 0, fixed_abs, tag = 'sflag constant byte address 0x0 - dummy sync flag']
  #allocation10 [shape = 's32[]', space=sflag, size = 0x4, offset = 0, fixed_abs, tag = 'sflag constant byte address 0x0 - dummy sync flag']
  #allocation11 [shape = 's32[]', space=sflag, size = 0x4, offset = 0, fixed_abs, tag = 'sflag constant byte address 0x0 - dummy sync flag']
  #allocation12 [shape = 's32[]', space=sflag, size = 0x4, offset = 0, fixed_abs, tag = 'sflag constant byte address 0x0 - dummy sync flag']
  #allocation13 [shape = 's32[]', space=sflag, size = 0x4, offset = 0, fixed_abs, tag = 'sflag constant byte address 0x0 - dummy sync flag']
  %s0 = inlined_call_operand.vmem [shape: s32[18], index: 0, kind: input, shape index: {}]
  %s1 = inlined_call_operand.vmem [shape: f32[2,17,128], index: 1, kind: input, shape index: {}]
  %s2 = inlined_call_operand.vmem [shape: f32[2,9,128], index: 2, kind: output, shape index: {}]
  %s3 = sld [smem:[#allocation0]]
  $region306: #{tpu_custom_call.1} parent=0
    _
  %s5 = ssub.s32 1, %s3
  %s6 = scalar_select 0, %s5, %s3
  %s7 = sshll.u32 %s0, 4
  %s8 = int_to_ptr.vmem [resolvable:$true] %s7
  %10 = dma.vmem_to_smem %s8, 16, [#allocation4], [#allocation3]
  %11 = dma.done [#allocation3], 16
  %12 = sfence
  loop: start=0, step=1, limit=3
  $region2: #{tpu_custom_call.1} parent=0 // loop_pre_header
    _
  $region3: #{tpu_custom_call.1} parent=0 // loop_header
    %s14 = sphi 0, %s18
    %p15 = scmp.ge.s32.totalorder %s14, 3
    %s23 = sphi 0, %s25
    %s26 = sphi 0, %s23
    %s36 = sphi 0, %s26
  $region4: #{tpu_custom_call.1} parent=0 // loop_header_branch
    %17 = sbr.rel (%p15) target = $region8
  $region5: #{tpu_custom_call.1} parent=0 // loop_body
    %s19 = ssub.s32 %s14, 1
    %s20 = sadd.s32 %s14, 1
    %s21 = ssub.s32 %s14, %s20
    %p22 = scmp.eq.s32.totalorder %s21, 0
    %s24 = sadd.s32 %s23, 1
    %s25 = scalar_select %p22, %s23, %s24
    %p27 = pneg %p22
    %p28 = scmp.eq.s32.totalorder %s14, 1
    %p29 = por %p27, %p28
    %p30 = scmp.ne.s32.totalorder %s23, %s26
    %p31 = scmp.eq.s32.totalorder %s14, 0
    %p32 = por %p30, %p31
    %p33 = scmp.ne.s32.totalorder %s23, %s26
    %p34 = scmp.eq.s32.totalorder %s19, 1
    %p35 = por %p33, %p34
    %p37 = scmp.ne.s32.totalorder %s26, %s36
    %p38 = scmp.eq.s32.totalorder %s19, 0
    %p39 = por %p37, %p38
    %p40 = scmp.lt.s32.totalorder %s14, 2
    // Predicated region
    $region9: #{tpu_custom_call.1} parent=5 // pred_check
      %p41 = pneg %p40
    $region10: #{tpu_custom_call.1} parent=5 // pred_check_branch
      %43 = sbr.rel (%p41) target = $region12
    $region11: #{tpu_custom_call.1} parent=5 // pred_region
      %p44 = pneg %p32
      %p45 = pneg %p29
      %p46 = scmp.lt.s32.totalorder %s14, 1
      %s47 = scalar_select %p46, %s14, 1
      %s48 = smul.addr %s47, 2
      %s49 = smul.addr %s48, 8
      %s50 = scalar_lea.vmem %s2, %s49
      %p51 = scmp.lt.s32.totalorder %s14, 1
      %s52 = scalar_select %p51, %s14, 1
      %s53 = smul.addr %s52, 2
      %s54 = smul.addr %s53, 8
      %s55 = scalar_lea.vmem %s2, %s54
      %s56 = smul.u32 %s14, 9
      %s57 = sld [smem:[#allocation4 + %s56]]
      %s58 = smul.u32 %s14, 24
      %s59 = sadd.s32 %s57, %s58
      %s60 = scalar_lea.vmem %s1, %s59
      %p62 = scmp.lt.u32.totalorder 1, 8
      %p63 = pneg %p62
      // Predicated region
      $region13: #{tpu_custom_call.1} parent=11 // pred_check
        _
      $region14: #{tpu_custom_call.1} parent=11 // pred_check_branch
        %65 = sbr.rel (%p62) target = $region16
      $region15: #{tpu_custom_call.1} parent=11 // pred_region
        %s80 = sand.u32 1, 7
        %p81 = scmp.eq.s32.totalorder %s80, 0
        %p82 = pneg %p81
        // Predicated region
        $region28: #{tpu_custom_call.1} parent=15 // pred_check
          _
        $region29: #{tpu_custom_call.1} parent=15 // pred_check_branch
          %84 = sbr.rel (%p81) target = $region31
        $region30: #{tpu_custom_call.1} parent=15 // pred_region
          %s85 = sand.u32 1, 7
          %s86 = ssub.s32 1, %s85
          %s87 = scalar_lea.vmem %s60, %s86
          %s88 = ssub.s32 1, %s85
          %s89 = scalar_lea.vmem %s55, %s88
          %s90 = sshllo.u32 0, %s85
          loop: start=0, step=1, limit=1
          $region32: #{tpu_custom_call.1} parent=30 // loop_pre_header
            _
          $region33: #{tpu_custom_call.1} parent=30 // loop_header
            %s92 = sphi 0, %s96
            %p93 = scmp.ge.s32.totalorder %s92, 1
            %s97 = sphi %s87, %s87
            %s98 = sphi %s89, %s89
          $region34: #{tpu_custom_call.1} parent=30 // loop_header_branch
            %95 = sbr.rel (%p93) target = $region38
          $region35: #{tpu_custom_call.1} parent=30 // loop_body
            %v99 = vld [vmem:[%s97] sm:%s90]
            %100 = vst [vmem:[%s98] sm:%s90] %v99
          $region36: #{tpu_custom_call.1} parent=30 // loop_footer
            %s96 = sadd.s32 1, %s92
          $region37: #{tpu_custom_call.1} parent=30 // loop_footer_branch
            %91 = sbr.rel target = $region33
          $region38: #{tpu_custom_call.1} parent=30 // loop_exit
            _
        $region31: #{tpu_custom_call.1} parent=15 // pred_fallthru
          _
      $region16: #{tpu_custom_call.1} parent=11 // pred_fallthru
        _
      // Predicated region
      $region17: #{tpu_custom_call.1} parent=11 // pred_check
        %p66 = pneg %p62
      $region18: #{tpu_custom_call.1} parent=11 // pred_check_branch
        %68 = sbr.rel (%p66) target = $region20
      $region19: #{tpu_custom_call.1} parent=11 // pred_region
        %s69 = sshllo.u32 0, 1
        loop: start=0, step=1, limit=1
        $region21: #{tpu_custom_call.1} parent=19 // loop_pre_header
          _
        $region22: #{tpu_custom_call.1} parent=19 // loop_header
          %s71 = sphi 0, %s75
          %p72 = scmp.ge.s32.totalorder %s71, 1
          %s76 = sphi %s60, %s60
          %s77 = sphi %s55, %s55
        $region23: #{tpu_custom_call.1} parent=19 // loop_header_branch
          %74 = sbr.rel (%p72) target = $region27
        $region24: #{tpu_custom_call.1} parent=19 // loop_body
          %v78 = vld [vmem:[%s76] sm:%s69]
          %79 = vst [vmem:[%s77] sm:%s69] %v78
        $region25: #{tpu_custom_call.1} parent=19 // loop_footer
          %s75 = sadd.s32 1, %s71
        $region26: #{tpu_custom_call.1} parent=19 // loop_footer_branch
          %70 = sbr.rel target = $region22
        $region27: #{tpu_custom_call.1} parent=19 // loop_exit
          _
      $region20: #{tpu_custom_call.1} parent=11 // pred_fallthru
        _
      // Predicated region
      $region39: #{tpu_custom_call.1} parent=11 // pred_check
        _
      $region40: #{tpu_custom_call.1} parent=11 // pred_check_branch
        %103 = sbr.rel (0) target = $region42
      $region41: #{tpu_custom_call.1} parent=11 // pred_region
        %104 = vsyncadd [#allocation2], 16
      $region42: #{tpu_custom_call.1} parent=11 // pred_fallthru
        _
      %s105 = sadd.s32 %s56, 1
      %s106 = sld [smem:[#allocation4 + %s105]]
      %s107 = sadd.s32 %s106, %s58
      %s108 = scalar_lea.vmem %s1, %s107
      %s109 = scalar_lea.vmem %s55, 1
      %s110 = scalar_lea.sflag [#allocation2], 1
      %p112 = scmp.lt.u32.totalorder 1, 8
      %p113 = pneg %p112
      // Predicated region
      $region43: #{tpu_custom_call.1} parent=11 // pred_check
        _
      $region44: #{tpu_custom_call.1} parent=11 // pred_check_branch
        %115 = sbr.rel (%p112) target = $region46
      $region45: #{tpu_custom_call.1} parent=11 // pred_region
        %s130 = sand.u32 1, 7
        %p131 = scmp.eq.s32.totalorder %s130, 0
        %p132 = pneg %p131
        // Predicated region
        $region58: #{tpu_custom_call.1} parent=45 // pred_check
          _
        $region59: #{tpu_custom_call.1} parent=45 // pred_check_branch
          %134 = sbr.rel (%p131) target = $region61
        $region60: #{tpu_custom_call.1} parent=45 // pred_region
          %s135 = sand.u32 1, 7
          %s136 = ssub.s32 1, %s135
          %s137 = scalar_lea.vmem %s108, %s136
          %s138 = ssub.s32 1, %s135
          %s139 = scalar_lea.vmem %s109, %s138
          %s140 = sshllo.u32 0, %s135
          loop: start=0, step=1, limit=1
          $region62: #{tpu_custom_call.1} parent=60 // loop_pre_header
            _
          $region63: #{tpu_custom_call.1} parent=60 // loop_header
            %s142 = sphi 0, %s146
            %p143 = scmp.ge.s32.totalorder %s142, 1
            %s147 = sphi %s137, %s137
            %s148 = sphi %s139, %s139
          $region64: #{tpu_custom_call.1} parent=60 // loop_header_branch
            %145 = sbr.rel (%p143) target = $region68
          $region65: #{tpu_custom_call.1} parent=60 // loop_body
            %v149 = vld [vmem:[%s147] sm:%s140]
            %150 = vst [vmem:[%s148] sm:%s140] %v149
          $region66: #{tpu_custom_call.1} parent=60 // loop_footer
            %s146 = sadd.s32 1, %s142
          $region67: #{tpu_custom_call.1} parent=60 // loop_footer_branch
            %141 = sbr.rel target = $region63
          $region68: #{tpu_custom_call.1} parent=60 // loop_exit
            _
        $region61: #{tpu_custom_call.1} parent=45 // pred_fallthru
          _
      $region46: #{tpu_custom_call.1} parent=11 // pred_fallthru
        _
      // Predicated region
      $region47: #{tpu_custom_call.1} parent=11 // pred_check
        %p116 = pneg %p112
      $region48: #{tpu_custom_call.1} parent=11 // pred_check_branch
        %118 = sbr.rel (%p116) target = $region50
      $region49: #{tpu_custom_call.1} parent=11 // pred_region
        %s119 = sshllo.u32 0, 1
        loop: start=0, step=1, limit=1
        $region51: #{tpu_custom_call.1} parent=49 // loop_pre_header
          _
        $region52: #{tpu_custom_call.1} parent=49 // loop_header
          %s121 = sphi 0, %s125
          %p122 = scmp.ge.s32.totalorder %s121, 1
          %s126 = sphi %s108, %s108
          %s127 = sphi %s109, %s109
        $region53: #{tpu_custom_call.1} parent=49 // loop_header_branch
          %124 = sbr.rel (%p122) target = $region57
        $region54: #{tpu_custom_call.1} parent=49 // loop_body
          %v128 = vld [vmem:[%s126] sm:%s119]
          %129 = vst [vmem:[%s127] sm:%s119] %v128
        $region55: #{tpu_custom_call.1} parent=49 // loop_footer
          %s125 = sadd.s32 1, %s121
        $region56: #{tpu_custom_call.1} parent=49 // loop_footer_branch
          %120 = sbr.rel target = $region52
        $region57: #{tpu_custom_call.1} parent=49 // loop_exit
          _
      $region50: #{tpu_custom_call.1} parent=11 // pred_fallthru
        _
      // Predicated region
      $region69: #{tpu_custom_call.1} parent=11 // pred_check
        _
      $region70: #{tpu_custom_call.1} parent=11 // pred_check_branch
        %153 = sbr.rel (0) target = $region72
      $region71: #{tpu_custom_call.1} parent=11 // pred_region
        %154 = vsyncadd %s110, 16
      $region72: #{tpu_custom_call.1} parent=11 // pred_fallthru
        _
      %s155 = sadd.s32 %s56, 2
      %s156 = sld [smem:[#allocation4 + %s155]]
      %s157 = sadd.s32 %s156, %s58
      %s158 = scalar_lea.vmem %s1, %s157
      %s159 = scalar_lea.vmem %s55, 2
      %s160 = scalar_lea.sflag [#allocation2], 2
      %p162 = scmp.lt.u32.totalorder 1, 8
      %p163 = pneg %p162
      // Predicated region
      $region73: #{tpu_custom_call.1} parent=11 // pred_check
        _
      $region74: #{tpu_custom_call.1} parent=11 // pred_check_branch
        %165 = sbr.rel (%p162) target = $region76
      $region75: #{tpu_custom_call.1} parent=11 // pred_region
        %s180 = sand.u32 1, 7
        %p181 = scmp.eq.s32.totalorder %s180, 0
        %p182 = pneg %p181
        // Predicated region
        $region88: #{tpu_custom_call.1} parent=75 // pred_check
          _
        $region89: #{tpu_custom_call.1} parent=75 // pred_check_branch
          %184 = sbr.rel (%p181) target = $region91
        $region90: #{tpu_custom_call.1} parent=75 // pred_region
          %s185 = sand.u32 1, 7
          %s186 = ssub.s32 1, %s185
          %s187 = scalar_lea.vmem %s158, %s186
          %s188 = ssub.s32 1, %s185
          %s189 = scalar_lea.vmem %s159, %s188
          %s190 = sshllo.u32 0, %s185
          loop: start=0, step=1, limit=1
          $region92: #{tpu_custom_call.1} parent=90 // loop_pre_header
            _
          $region93: #{tpu_custom_call.1} parent=90 // loop_header
            %s192 = sphi 0, %s196
            %p193 = scmp.ge.s32.totalorder %s192, 1
            %s197 = sphi %s187, %s187
            %s198 = sphi %s189, %s189
          $region94: #{tpu_custom_call.1} parent=90 // loop_header_branch
            %195 = sbr.rel (%p193) target = $region98
          $region95: #{tpu_custom_call.1} parent=90 // loop_body
            %v199 = vld [vmem:[%s197] sm:%s190]
            %200 = vst [vmem:[%s198] sm:%s190] %v199
          $region96: #{tpu_custom_call.1} parent=90 // loop_footer
            %s196 = sadd.s32 1, %s192
          $region97: #{tpu_custom_call.1} parent=90 // loop_footer_branch
            %191 = sbr.rel target = $region93
          $region98: #{tpu_custom_call.1} parent=90 // loop_exit
            _
        $region91: #{tpu_custom_call.1} parent=75 // pred_fallthru
          _
      $region76: #{tpu_custom_call.1} parent=11 // pred_fallthru
        _
      // Predicated region
      $region77: #{tpu_custom_call.1} parent=11 // pred_check
        %p166 = pneg %p162
      $region78: #{tpu_custom_call.1} parent=11 // pred_check_branch
        %168 = sbr.rel (%p166) target = $region80
      $region79: #{tpu_custom_call.1} parent=11 // pred_region
        %s169 = sshllo.u32 0, 1
        loop: start=0, step=1, limit=1
        $region81: #{tpu_custom_call.1} parent=79 // loop_pre_header
          _
        $region82: #{tpu_custom_call.1} parent=79 // loop_header
          %s171 = sphi 0, %s175
          %p172 = scmp.ge.s32.totalorder %s171, 1
          %s176 = sphi %s158, %s158
          %s177 = sphi %s159, %s159
        $region83: #{tpu_custom_call.1} parent=79 // loop_header_branch
          %174 = sbr.rel (%p172) target = $region87
        $region84: #{tpu_custom_call.1} parent=79 // loop_body
          %v178 = vld [vmem:[%s176] sm:%s169]
          %179 = vst [vmem:[%s177] sm:%s169] %v178
        $region85: #{tpu_custom_call.1} parent=79 // loop_footer
          %s175 = sadd.s32 1, %s171
        $region86: #{tpu_custom_call.1} parent=79 // loop_footer_branch
          %170 = sbr.rel target = $region82
        $region87: #{tpu_custom_call.1} parent=79 // loop_exit
          _
      $region80: #{tpu_custom_call.1} parent=11 // pred_fallthru
        _
      // Predicated region
      $region99: #{tpu_custom_call.1} parent=11 // pred_check
        _
      $region100: #{tpu_custom_call.1} parent=11 // pred_check_branch
        %203 = sbr.rel (0) target = $region102
      $region101: #{tpu_custom_call.1} parent=11 // pred_region
        %204 = vsyncadd %s160, 16
      $region102: #{tpu_custom_call.1} parent=11 // pred_fallthru
        _
      %s205 = sadd.s32 %s56, 3
      %s206 = sld [smem:[#allocation4 + %s205]]
      %s207 = sadd.s32 %s206, %s58
      %s208 = scalar_lea.vmem %s1, %s207
      %s209 = scalar_lea.vmem %s55, 3
      %s210 = scalar_lea.sflag [#allocation2], 3
      %p212 = scmp.lt.u32.totalorder 1, 8
      %p213 = pneg %p212
      // Predicated region
      $region103: #{tpu_custom_call.1} parent=11 // pred_check
        _
      $region104: #{tpu_custom_call.1} parent=11 // pred_check_branch
        %215 = sbr.rel (%p212) target = $region106
      $region105: #{tpu_custom_call.1} parent=11 // pred_region
        %s230 = sand.u32 1, 7
        %p231 = scmp.eq.s32.totalorder %s230, 0
        %p232 = pneg %p231
        // Predicated region
        $region118: #{tpu_custom_call.1} parent=105 // pred_check
          _
        $region119: #{tpu_custom_call.1} parent=105 // pred_check_branch
          %234 = sbr.rel (%p231) target = $region121
        $region120: #{tpu_custom_call.1} parent=105 // pred_region
          %s235 = sand.u32 1, 7
          %s236 = ssub.s32 1, %s235
          %s237 = scalar_lea.vmem %s208, %s236
          %s238 = ssub.s32 1, %s235
          %s239 = scalar_lea.vmem %s209, %s238
          %s240 = sshllo.u32 0, %s235
          loop: start=0, step=1, limit=1
          $region122: #{tpu_custom_call.1} parent=120 // loop_pre_header
            _
          $region123: #{tpu_custom_call.1} parent=120 // loop_header
            %s242 = sphi 0, %s246
            %p243 = scmp.ge.s32.totalorder %s242, 1
            %s247 = sphi %s237, %s237
            %s248 = sphi %s239, %s239
          $region124: #{tpu_custom_call.1} parent=120 // loop_header_branch
            %245 = sbr.rel (%p243) target = $region128
          $region125: #{tpu_custom_call.1} parent=120 // loop_body
            %v249 = vld [vmem:[%s247] sm:%s240]
            %250 = vst [vmem:[%s248] sm:%s240] %v249
          $region126: #{tpu_custom_call.1} parent=120 // loop_footer
            %s246 = sadd.s32 1, %s242
          $region127: #{tpu_custom_call.1} parent=120 // loop_footer_branch
            %241 = sbr.rel target = $region123
          $region128: #{tpu_custom_call.1} parent=120 // loop_exit
            _
        $region121: #{tpu_custom_call.1} parent=105 // pred_fallthru
          _
      $region106: #{tpu_custom_call.1} parent=11 // pred_fallthru
        _
      // Predicated region
      $region107: #{tpu_custom_call.1} parent=11 // pred_check
        %p216 = pneg %p212
      $region108: #{tpu_custom_call.1} parent=11 // pred_check_branch
        %218 = sbr.rel (%p216) target = $region110
      $region109: #{tpu_custom_call.1} parent=11 // pred_region
        %s219 = sshllo.u32 0, 1
        loop: start=0, step=1, limit=1
        $region111: #{tpu_custom_call.1} parent=109 // loop_pre_header
          _
        $region112: #{tpu_custom_call.1} parent=109 // loop_header
          %s221 = sphi 0, %s225
          %p222 = scmp.ge.s32.totalorder %s221, 1
          %s226 = sphi %s208, %s208
          %s227 = sphi %s209, %s209
        $region113: #{tpu_custom_call.1} parent=109 // loop_header_branch
          %224 = sbr.rel (%p222) target = $region117
        $region114: #{tpu_custom_call.1} parent=109 // loop_body
          %v228 = vld [vmem:[%s226] sm:%s219]
          %229 = vst [vmem:[%s227] sm:%s219] %v228
        $region115: #{tpu_custom_call.1} parent=109 // loop_footer
          %s225 = sadd.s32 1, %s221
        $region116: #{tpu_custom_call.1} parent=109 // loop_footer_branch
          %220 = sbr.rel target = $region112
        $region117: #{tpu_custom_call.1} parent=109 // loop_exit
          _
      $region110: #{tpu_custom_call.1} parent=11 // pred_fallthru
        _
      // Predicated region
      $region129: #{tpu_custom_call.1} parent=11 // pred_check
        _
      $region130: #{tpu_custom_call.1} parent=11 // pred_check_branch
        %253 = sbr.rel (0) target = $region132
      $region131: #{tpu_custom_call.1} parent=11 // pred_region
        %254 = vsyncadd %s210, 16
      $region132: #{tpu_custom_call.1} parent=11 // pred_fallthru
        _
      %s255 = sadd.s32 %s56, 4
      %s256 = sld [smem:[#allocation4 + %s255]]
      %s257 = sadd.s32 %s256, %s58
      %s258 = scalar_lea.vmem %s1, %s257
      %s259 = scalar_lea.vmem %s55, 4
      %s260 = scalar_lea.sflag [#allocation2], 4
      %p262 = scmp.lt.u32.totalorder 1, 8
      %p263 = pneg %p262
      // Predicated region
      $region133: #{tpu_custom_call.1} parent=11 // pred_check
        _
      $region134: #{tpu_custom_call.1} parent=11 // pred_check_branch
        %265 = sbr.rel (%p262) target = $region136
      $region135: #{tpu_custom_call.1} parent=11 // pred_region
        %s280 = sand.u32 1, 7
        %p281 = scmp.eq.s32.totalorder %s280, 0
        %p282 = pneg %p281
        // Predicated region
        $region148: #{tpu_custom_call.1} parent=135 // pred_check
          _
        $region149: #{tpu_custom_call.1} parent=135 // pred_check_branch
          %284 = sbr.rel (%p281) target = $region151
        $region150: #{tpu_custom_call.1} parent=135 // pred_region
          %s285 = sand.u32 1, 7
          %s286 = ssub.s32 1, %s285
          %s287 = scalar_lea.vmem %s258, %s286
          %s288 = ssub.s32 1, %s285
          %s289 = scalar_lea.vmem %s259, %s288
          %s290 = sshllo.u32 0, %s285
          loop: start=0, step=1, limit=1
          $region152: #{tpu_custom_call.1} parent=150 // loop_pre_header
            _
          $region153: #{tpu_custom_call.1} parent=150 // loop_header
            %s292 = sphi 0, %s296
            %p293 = scmp.ge.s32.totalorder %s292, 1
            %s297 = sphi %s287, %s287
            %s298 = sphi %s289, %s289
          $region154: #{tpu_custom_call.1} parent=150 // loop_header_branch
            %295 = sbr.rel (%p293) target = $region158
          $region155: #{tpu_custom_call.1} parent=150 // loop_body
            %v299 = vld [vmem:[%s297] sm:%s290]
            %300 = vst [vmem:[%s298] sm:%s290] %v299
          $region156: #{tpu_custom_call.1} parent=150 // loop_footer
            %s296 = sadd.s32 1, %s292
          $region157: #{tpu_custom_call.1} parent=150 // loop_footer_branch
            %291 = sbr.rel target = $region153
          $region158: #{tpu_custom_call.1} parent=150 // loop_exit
            _
        $region151: #{tpu_custom_call.1} parent=135 // pred_fallthru
          _
      $region136: #{tpu_custom_call.1} parent=11 // pred_fallthru
        _
      // Predicated region
      $region137: #{tpu_custom_call.1} parent=11 // pred_check
        %p266 = pneg %p262
      $region138: #{tpu_custom_call.1} parent=11 // pred_check_branch
        %268 = sbr.rel (%p266) target = $region140
      $region139: #{tpu_custom_call.1} parent=11 // pred_region
        %s269 = sshllo.u32 0, 1
        loop: start=0, step=1, limit=1
        $region141: #{tpu_custom_call.1} parent=139 // loop_pre_header
          _
        $region142: #{tpu_custom_call.1} parent=139 // loop_header
          %s271 = sphi 0, %s275
          %p272 = scmp.ge.s32.totalorder %s271, 1
          %s276 = sphi %s258, %s258
          %s277 = sphi %s259, %s259
        $region143: #{tpu_custom_call.1} parent=139 // loop_header_branch
          %274 = sbr.rel (%p272) target = $region147
        $region144: #{tpu_custom_call.1} parent=139 // loop_body
          %v278 = vld [vmem:[%s276] sm:%s269]
          %279 = vst [vmem:[%s277] sm:%s269] %v278
        $region145: #{tpu_custom_call.1} parent=139 // loop_footer
          %s275 = sadd.s32 1, %s271
        $region146: #{tpu_custom_call.1} parent=139 // loop_footer_branch
          %270 = sbr.rel target = $region142
        $region147: #{tpu_custom_call.1} parent=139 // loop_exit
          _
      $region140: #{tpu_custom_call.1} parent=11 // pred_fallthru
        _
      // Predicated region
      $region159: #{tpu_custom_call.1} parent=11 // pred_check
        _
      $region160: #{tpu_custom_call.1} parent=11 // pred_check_branch
        %303 = sbr.rel (0) target = $region162
      $region161: #{tpu_custom_call.1} parent=11 // pred_region
        %304 = vsyncadd %s260, 16
      $region162: #{tpu_custom_call.1} parent=11 // pred_fallthru
        _
      %s305 = sadd.s32 %s56, 5
      %s306 = sld [smem:[#allocation4 + %s305]]
      %s307 = sadd.s32 %s306, %s58
      %s308 = scalar_lea.vmem %s1, %s307
      %s309 = scalar_lea.vmem %s55, 5
      %s310 = scalar_lea.sflag [#allocation2], 5
      %p312 = scmp.lt.u32.totalorder 1, 8
      %p313 = pneg %p312
      // Predicated region
      $region163: #{tpu_custom_call.1} parent=11 // pred_check
        _
      $region164: #{tpu_custom_call.1} parent=11 // pred_check_branch
        %315 = sbr.rel (%p312) target = $region166
      $region165: #{tpu_custom_call.1} parent=11 // pred_region
        %s330 = sand.u32 1, 7
        %p331 = scmp.eq.s32.totalorder %s330, 0
        %p332 = pneg %p331
        // Predicated region
        $region178: #{tpu_custom_call.1} parent=165 // pred_check
          _
        $region179: #{tpu_custom_call.1} parent=165 // pred_check_branch
          %334 = sbr.rel (%p331) target = $region181
        $region180: #{tpu_custom_call.1} parent=165 // pred_region
          %s335 = sand.u32 1, 7
          %s336 = ssub.s32 1, %s335
          %s337 = scalar_lea.vmem %s308, %s336
          %s338 = ssub.s32 1, %s335
          %s339 = scalar_lea.vmem %s309, %s338
          %s340 = sshllo.u32 0, %s335
          loop: start=0, step=1, limit=1
          $region182: #{tpu_custom_call.1} parent=180 // loop_pre_header
            _
          $region183: #{tpu_custom_call.1} parent=180 // loop_header
            %s342 = sphi 0, %s346
            %p343 = scmp.ge.s32.totalorder %s342, 1
            %s347 = sphi %s337, %s337
            %s348 = sphi %s339, %s339
          $region184: #{tpu_custom_call.1} parent=180 // loop_header_branch
            %345 = sbr.rel (%p343) target = $region188
          $region185: #{tpu_custom_call.1} parent=180 // loop_body
            %v349 = vld [vmem:[%s347] sm:%s340]
            %350 = vst [vmem:[%s348] sm:%s340] %v349
          $region186: #{tpu_custom_call.1} parent=180 // loop_footer
            %s346 = sadd.s32 1, %s342
          $region187: #{tpu_custom_call.1} parent=180 // loop_footer_branch
            %341 = sbr.rel target = $region183
          $region188: #{tpu_custom_call.1} parent=180 // loop_exit
            _
        $region181: #{tpu_custom_call.1} parent=165 // pred_fallthru
          _
      $region166: #{tpu_custom_call.1} parent=11 // pred_fallthru
        _
      // Predicated region
      $region167: #{tpu_custom_call.1} parent=11 // pred_check
        %p316 = pneg %p312
      $region168: #{tpu_custom_call.1} parent=11 // pred_check_branch
        %318 = sbr.rel (%p316) target = $region170
      $region169: #{tpu_custom_call.1} parent=11 // pred_region
        %s319 = sshllo.u32 0, 1
        loop: start=0, step=1, limit=1
        $region171: #{tpu_custom_call.1} parent=169 // loop_pre_header
          _
        $region172: #{tpu_custom_call.1} parent=169 // loop_header
          %s321 = sphi 0, %s325
          %p322 = scmp.ge.s32.totalorder %s321, 1
          %s326 = sphi %s308, %s308
          %s327 = sphi %s309, %s309
        $region173: #{tpu_custom_call.1} parent=169 // loop_header_branch
          %324 = sbr.rel (%p322) target = $region177
        $region174: #{tpu_custom_call.1} parent=169 // loop_body
          %v328 = vld [vmem:[%s326] sm:%s319]
          %329 = vst [vmem:[%s327] sm:%s319] %v328
        $region175: #{tpu_custom_call.1} parent=169 // loop_footer
          %s325 = sadd.s32 1, %s321
        $region176: #{tpu_custom_call.1} parent=169 // loop_footer_branch
          %320 = sbr.rel target = $region172
        $region177: #{tpu_custom_call.1} parent=169 // loop_exit
          _
      $region170: #{tpu_custom_call.1} parent=11 // pred_fallthru
        _
      // Predicated region
      $region189: #{tpu_custom_call.1} parent=11 // pred_check
        _
      $region190: #{tpu_custom_call.1} parent=11 // pred_check_branch
        %353 = sbr.rel (0) target = $region192
      $region191: #{tpu_custom_call.1} parent=11 // pred_region
        %354 = vsyncadd %s310, 16
      $region192: #{tpu_custom_call.1} parent=11 // pred_fallthru
        _
      %s355 = sadd.s32 %s56, 6
      %s356 = sld [smem:[#allocation4 + %s355]]
      %s357 = sadd.s32 %s356, %s58
      %s358 = scalar_lea.vmem %s1, %s357
      %s359 = scalar_lea.vmem %s55, 6
      %s360 = scalar_lea.sflag [#allocation2], 6
      %p362 = scmp.lt.u32.totalorder 1, 8
      %p363 = pneg %p362
      // Predicated region
      $region193: #{tpu_custom_call.1} parent=11 // pred_check
        _
      $region194: #{tpu_custom_call.1} parent=11 // pred_check_branch
        %365 = sbr.rel (%p362) target = $region196
      $region195: #{tpu_custom_call.1} parent=11 // pred_region
        %s380 = sand.u32 1, 7
        %p381 = scmp.eq.s32.totalorder %s380, 0
        %p382 = pneg %p381
        // Predicated region
        $region208: #{tpu_custom_call.1} parent=195 // pred_check
          _
        $region209: #{tpu_custom_call.1} parent=195 // pred_check_branch
          %384 = sbr.rel (%p381) target = $region211
        $region210: #{tpu_custom_call.1} parent=195 // pred_region
          %s385 = sand.u32 1, 7
          %s386 = ssub.s32 1, %s385
          %s387 = scalar_lea.vmem %s358, %s386
          %s388 = ssub.s32 1, %s385
          %s389 = scalar_lea.vmem %s359, %s388
          %s390 = sshllo.u32 0, %s385
          loop: start=0, step=1, limit=1
          $region212: #{tpu_custom_call.1} parent=210 // loop_pre_header
            _
          $region213: #{tpu_custom_call.1} parent=210 // loop_header
            %s392 = sphi 0, %s396
            %p393 = scmp.ge.s32.totalorder %s392, 1
            %s397 = sphi %s387, %s387
            %s398 = sphi %s389, %s389
          $region214: #{tpu_custom_call.1} parent=210 // loop_header_branch
            %395 = sbr.rel (%p393) target = $region218
          $region215: #{tpu_custom_call.1} parent=210 // loop_body
            %v399 = vld [vmem:[%s397] sm:%s390]
            %400 = vst [vmem:[%s398] sm:%s390] %v399
          $region216: #{tpu_custom_call.1} parent=210 // loop_footer
            %s396 = sadd.s32 1, %s392
          $region217: #{tpu_custom_call.1} parent=210 // loop_footer_branch
            %391 = sbr.rel target = $region213
          $region218: #{tpu_custom_call.1} parent=210 // loop_exit
            _
        $region211: #{tpu_custom_call.1} parent=195 // pred_fallthru
          _
      $region196: #{tpu_custom_call.1} parent=11 // pred_fallthru
        _
      // Predicated region
      $region197: #{tpu_custom_call.1} parent=11 // pred_check
        %p366 = pneg %p362
      $region198: #{tpu_custom_call.1} parent=11 // pred_check_branch
        %368 = sbr.rel (%p366) target = $region200
      $region199: #{tpu_custom_call.1} parent=11 // pred_region
        %s369 = sshllo.u32 0, 1
        loop: start=0, step=1, limit=1
        $region201: #{tpu_custom_call.1} parent=199 // loop_pre_header
          _
        $region202: #{tpu_custom_call.1} parent=199 // loop_header
          %s371 = sphi 0, %s375
          %p372 = scmp.ge.s32.totalorder %s371, 1
          %s376 = sphi %s358, %s358
          %s377 = sphi %s359, %s359
        $region203: #{tpu_custom_call.1} parent=199 // loop_header_branch
          %374 = sbr.rel (%p372) target = $region207
        $region204: #{tpu_custom_call.1} parent=199 // loop_body
          %v378 = vld [vmem:[%s376] sm:%s369]
          %379 = vst [vmem:[%s377] sm:%s369] %v378
        $region205: #{tpu_custom_call.1} parent=199 // loop_footer
          %s375 = sadd.s32 1, %s371
        $region206: #{tpu_custom_call.1} parent=199 // loop_footer_branch
          %370 = sbr.rel target = $region202
        $region207: #{tpu_custom_call.1} parent=199 // loop_exit
          _
      $region200: #{tpu_custom_call.1} parent=11 // pred_fallthru
        _
      // Predicated region
      $region219: #{tpu_custom_call.1} parent=11 // pred_check
        _
      $region220: #{tpu_custom_call.1} parent=11 // pred_check_branch
        %403 = sbr.rel (0) target = $region222
      $region221: #{tpu_custom_call.1} parent=11 // pred_region
        %404 = vsyncadd %s360, 16
      $region222: #{tpu_custom_call.1} parent=11 // pred_fallthru
        _
      %s405 = sadd.s32 %s56, 7
      %s406 = sld [smem:[#allocation4 + %s405]]
      %s407 = sadd.s32 %s406, %s58
      %s408 = scalar_lea.vmem %s1, %s407
      %s409 = scalar_lea.vmem %s55, 7
      %s410 = scalar_lea.sflag [#allocation2], 7
      %p412 = scmp.lt.u32.totalorder 1, 8
      %p413 = pneg %p412
      // Predicated region
      $region223: #{tpu_custom_call.1} parent=11 // pred_check
        _
      $region224: #{tpu_custom_call.1} parent=11 // pred_check_branch
        %415 = sbr.rel (%p412) target = $region226
      $region225: #{tpu_custom_call.1} parent=11 // pred_region
        %s430 = sand.u32 1, 7
        %p431 = scmp.eq.s32.totalorder %s430, 0
        %p432 = pneg %p431
        // Predicated region
        $region238: #{tpu_custom_call.1} parent=225 // pred_check
          _
        $region239: #{tpu_custom_call.1} parent=225 // pred_check_branch
          %434 = sbr.rel (%p431) target = $region241
        $region240: #{tpu_custom_call.1} parent=225 // pred_region
          %s435 = sand.u32 1, 7
          %s436 = ssub.s32 1, %s435
          %s437 = scalar_lea.vmem %s408, %s436
          %s438 = ssub.s32 1, %s435
          %s439 = scalar_lea.vmem %s409, %s438
          %s440 = sshllo.u32 0, %s435
          loop: start=0, step=1, limit=1
          $region242: #{tpu_custom_call.1} parent=240 // loop_pre_header
            _
          $region243: #{tpu_custom_call.1} parent=240 // loop_header
            %s442 = sphi 0, %s446
            %p443 = scmp.ge.s32.totalorder %s442, 1
            %s447 = sphi %s437, %s437
            %s448 = sphi %s439, %s439
          $region244: #{tpu_custom_call.1} parent=240 // loop_header_branch
            %445 = sbr.rel (%p443) target = $region248
          $region245: #{tpu_custom_call.1} parent=240 // loop_body
            %v449 = vld [vmem:[%s447] sm:%s440]
            %450 = vst [vmem:[%s448] sm:%s440] %v449
          $region246: #{tpu_custom_call.1} parent=240 // loop_footer
            %s446 = sadd.s32 1, %s442
          $region247: #{tpu_custom_call.1} parent=240 // loop_footer_branch
            %441 = sbr.rel target = $region243
          $region248: #{tpu_custom_call.1} parent=240 // loop_exit
            _
        $region241: #{tpu_custom_call.1} parent=225 // pred_fallthru
          _
      $region226: #{tpu_custom_call.1} parent=11 // pred_fallthru
        _
      // Predicated region
      $region227: #{tpu_custom_call.1} parent=11 // pred_check
        %p416 = pneg %p412
      $region228: #{tpu_custom_call.1} parent=11 // pred_check_branch
        %418 = sbr.rel (%p416) target = $region230
      $region229: #{tpu_custom_call.1} parent=11 // pred_region
        %s419 = sshllo.u32 0, 1
        loop: start=0, step=1, limit=1
        $region231: #{tpu_custom_call.1} parent=229 // loop_pre_header
          _
        $region232: #{tpu_custom_call.1} parent=229 // loop_header
          %s421 = sphi 0, %s425
          %p422 = scmp.ge.s32.totalorder %s421, 1
          %s426 = sphi %s408, %s408
          %s427 = sphi %s409, %s409
        $region233: #{tpu_custom_call.1} parent=229 // loop_header_branch
          %424 = sbr.rel (%p422) target = $region237
        $region234: #{tpu_custom_call.1} parent=229 // loop_body
          %v428 = vld [vmem:[%s426] sm:%s419]
          %429 = vst [vmem:[%s427] sm:%s419] %v428
        $region235: #{tpu_custom_call.1} parent=229 // loop_footer
          %s425 = sadd.s32 1, %s421
        $region236: #{tpu_custom_call.1} parent=229 // loop_footer_branch
          %420 = sbr.rel target = $region232
        $region237: #{tpu_custom_call.1} parent=229 // loop_exit
          _
      $region230: #{tpu_custom_call.1} parent=11 // pred_fallthru
        _
      // Predicated region
      $region249: #{tpu_custom_call.1} parent=11 // pred_check
        _
      $region250: #{tpu_custom_call.1} parent=11 // pred_check_branch
        %453 = sbr.rel (0) target = $region252
      $region251: #{tpu_custom_call.1} parent=11 // pred_region
        %454 = vsyncadd %s410, 16
      $region252: #{tpu_custom_call.1} parent=11 // pred_fallthru
        _
      loop: start=0, step=1, limit=9
      $region253: #{tpu_custom_call.1} parent=11 // loop_pre_header
        _
      $region254: #{tpu_custom_call.1} parent=11 // loop_header
        %s456 = sphi 0, %s460
        %p457 = scmp.ge.s32.totalorder %s456, 9
      $region255: #{tpu_custom_call.1} parent=11 // loop_header_branch
        %459 = sbr.rel (%p457) target = $region259
      $region256: #{tpu_custom_call.1} parent=11 // loop_body
        %p461 = scmp.lt.s32.totalorder %s456, 0
        %s462 = ssub.s32 0, %s456
        %s463 = scalar_select %p461, %s462, %s456
        %s464 = sand.u32 %s463, 7
        %s465 = ssub.s32 0, %s464
        %s466 = scalar_select %p461, %s465, %s464
        %p467 = scmp.ne.s32.totalorder %s466, 0
        %p468 = scmp.lt.s32.totalorder %s466, 0
        %p469 = pnand %p468, %p467
        %p470 = pneg %p469
        %s471 = sadd.s32 %s466, 8
        %s472 = scalar_select %p470, %s471, %s466
        %s473 = sadd.s32 %s56, %s456
        %s474 = sld [smem:[#allocation4 + %s473]]
        %s475 = scalar_lea.sflag [#allocation2], %s472
        %s476 = smul.u32 1, 1
        %s477 = smul.u32 %s476, 1
        %s478 = sshll.u32 %s477, 4
        %479 = dma.done %s475, %s478
        %s480 = sadd.s32 %s456, 8
        %p481 = scmp.lt.s32.totalorder %s480, 9
        // Predicated region
        $region260: #{tpu_custom_call.1} parent=256 // pred_check
          %p482 = pneg %p481
        $region261: #{tpu_custom_call.1} parent=256 // pred_check_branch
          %484 = sbr.rel (%p482) target = $region263
        $region262: #{tpu_custom_call.1} parent=256 // pred_region
          %s485 = sadd.s32 %s56, %s480
          %s486 = sld [smem:[#allocation4 + %s485]]
          %s487 = sadd.s32 %s486, %s58
          %s488 = scalar_lea.vmem %s1, %s487
          %s489 = scalar_lea.vmem %s55, %s480
          %p491 = scmp.lt.u32.totalorder 1, 8
          %p492 = pneg %p491
          // Predicated region
          $region264: #{tpu_custom_call.1} parent=262 // pred_check
            _
          $region265: #{tpu_custom_call.1} parent=262 // pred_check_branch
            %494 = sbr.rel (%p491) target = $region267
          $region266: #{tpu_custom_call.1} parent=262 // pred_region
            %s509 = sand.u32 1, 7
            %p510 = scmp.eq.s32.totalorder %s509, 0
            %p511 = pneg %p510
            // Predicated region
            $region279: #{tpu_custom_call.1} parent=266 // pred_check
              _
            $region280: #{tpu_custom_call.1} parent=266 // pred_check_branch
              %513 = sbr.rel (%p510) target = $region282
            $region281: #{tpu_custom_call.1} parent=266 // pred_region
              %s514 = sand.u32 1, 7
              %s515 = ssub.s32 1, %s514
              %s516 = scalar_lea.vmem %s488, %s515
              %s517 = ssub.s32 1, %s514
              %s518 = scalar_lea.vmem %s489, %s517
              %s519 = sshllo.u32 0, %s514
              loop: start=0, step=1, limit=1
              $region283: #{tpu_custom_call.1} parent=281 // loop_pre_header
                _
              $region284: #{tpu_custom_call.1} parent=281 // loop_header
                %s521 = sphi 0, %s525
                %p522 = scmp.ge.s32.totalorder %s521, 1
                %s526 = sphi %s516, %s516
                %s527 = sphi %s518, %s518
              $region285: #{tpu_custom_call.1} parent=281 // loop_header_branch
                %524 = sbr.rel (%p522) target = $region289
              $region286: #{tpu_custom_call.1} parent=281 // loop_body
                %v528 = vld [vmem:[%s526] sm:%s519]
                %529 = vst [vmem:[%s527] sm:%s519] %v528
              $region287: #{tpu_custom_call.1} parent=281 // loop_footer
                %s525 = sadd.s32 1, %s521
              $region288: #{tpu_custom_call.1} parent=281 // loop_footer_branch
                %520 = sbr.rel target = $region284
              $region289: #{tpu_custom_call.1} parent=281 // loop_exit
                _
            $region282: #{tpu_custom_call.1} parent=266 // pred_fallthru
              _
          $region267: #{tpu_custom_call.1} parent=262 // pred_fallthru
            _
          // Predicated region
          $region268: #{tpu_custom_call.1} parent=262 // pred_check
            %p495 = pneg %p491
          $region269: #{tpu_custom_call.1} parent=262 // pred_check_branch
            %497 = sbr.rel (%p495) target = $region271
          $region270: #{tpu_custom_call.1} parent=262 // pred_region
            %s498 = sshllo.u32 0, 1
            loop: start=0, step=1, limit=1
            $region272: #{tpu_custom_call.1} parent=270 // loop_pre_header
              _
            $region273: #{tpu_custom_call.1} parent=270 // loop_header
              %s500 = sphi 0, %s504
              %p501 = scmp.ge.s32.totalorder %s500, 1
              %s505 = sphi %s488, %s488
              %s506 = sphi %s489, %s489
            $region274: #{tpu_custom_call.1} parent=270 // loop_header_branch
              %503 = sbr.rel (%p501) target = $region278
            $region275: #{tpu_custom_call.1} parent=270 // loop_body
              %v507 = vld [vmem:[%s505] sm:%s498]
              %508 = vst [vmem:[%s506] sm:%s498] %v507
            $region276: #{tpu_custom_call.1} parent=270 // loop_footer
              %s504 = sadd.s32 1, %s500
            $region277: #{tpu_custom_call.1} parent=270 // loop_footer_branch
              %499 = sbr.rel target = $region273
            $region278: #{tpu_custom_call.1} parent=270 // loop_exit
              _
          $region271: #{tpu_custom_call.1} parent=262 // pred_fallthru
            _
          // Predicated region
          $region290: #{tpu_custom_call.1} parent=262 // pred_check
            _
          $region291: #{tpu_custom_call.1} parent=262 // pred_check_branch
            %532 = sbr.rel (0) target = $region293
          $region292: #{tpu_custom_call.1} parent=262 // pred_region
            %533 = vsyncadd %s475, 16
          $region293: #{tpu_custom_call.1} parent=262 // pred_fallthru
            _
        $region263: #{tpu_custom_call.1} parent=256 // pred_fallthru
          _
      $region257: #{tpu_custom_call.1} parent=11 // loop_footer
        %s460 = sadd.s32 1, %s456
      $region258: #{tpu_custom_call.1} parent=11 // loop_footer_branch
        %455 = sbr.rel target = $region254
      $region259: #{tpu_custom_call.1} parent=11 // loop_exit
        _
      %p534 = scmp.lt.s32.totalorder %s14, 1
      %s535 = scalar_select %p534, %s14, 1
      %s536 = smul.addr %s535, 2
      %s537 = smul.addr %s536, 8
      %s538 = scalar_lea.vmem %s2, %s537
      // Predicated region
      $region294: #{tpu_custom_call.1} parent=11 // pred_check
        %p539 = pneg %p29
      $region295: #{tpu_custom_call.1} parent=11 // pred_check_branch
        %541 = sbr.rel (%p539) target = $region297
      $region296: #{tpu_custom_call.1} parent=11 // pred_region
        _
      $region297: #{tpu_custom_call.1} parent=11 // pred_fallthru
        _
    $region12: #{tpu_custom_call.1} parent=5 // pred_fallthru
      _
    %p542 = scmp.le.s32.totalorder 1, %s14
    // Predicated region
    $region298: #{tpu_custom_call.1} parent=5 // pred_check
      %p543 = pneg %p542
    $region299: #{tpu_custom_call.1} parent=5 // pred_check_branch
      %545 = sbr.rel (%p543) target = $region301
    $region300: #{tpu_custom_call.1} parent=5 // pred_region
      %s546 = ssub.s32 %s14, 1
      // Predicated region
      $region302: #{tpu_custom_call.1} parent=300 // pred_check
        %p547 = pneg %p35
      $region303: #{tpu_custom_call.1} parent=300 // pred_check_branch
        %549 = sbr.rel (%p547) target = $region305
      $region304: #{tpu_custom_call.1} parent=300 // pred_region
        %p550 = scmp.lt.s32.totalorder %s19, 1
        %s551 = scalar_select %p550, %s19, 1
        %s552 = smul.addr %s551, 2
        %s553 = smul.addr %s552, 8
        %s554 = scalar_lea.vmem %s2, %s553
      $region305: #{tpu_custom_call.1} parent=300 // pred_fallthru
        _
    $region301: #{tpu_custom_call.1} parent=5 // pred_fallthru
      _
  $region6: #{tpu_custom_call.1} parent=0 // loop_footer
    %s18 = sadd.s32 1, %s14
  $region7: #{tpu_custom_call.1} parent=0 // loop_footer_branch
    %13 = sbr.rel target = $region3
  $region8: #{tpu_custom_call.1} parent=0 // loop_exit
    _
  %555 = vsyncmov [#allocation2]
  %s556 = vpop.sfrf %555
  %p557 = scmp.eq.s32.totalorder %s556, 0
  %p558 = pneg %p557
  %560 = shalt.err (%p558)
  %s561 = scalar_lea.sflag [#allocation2], 1
  %562 = vsyncmov %s561
  %s563 = vpop.sfrf %562
  %p564 = scmp.eq.s32.totalorder %s563, 0
  %p565 = pneg %p564
  %567 = shalt.err (%p565)
  %s568 = scalar_lea.sflag [#allocation2], 2
  %569 = vsyncmov %s568
  %s570 = vpop.sfrf %569
  %p571 = scmp.eq.s32.totalorder %s570, 0
  %p572 = pneg %p571
  %574 = shalt.err (%p572)
  %s575 = scalar_lea.sflag [#allocation2], 3
  %576 = vsyncmov %s575
  %s577 = vpop.sfrf %576
  %p578 = scmp.eq.s32.totalorder %s577, 0
  %p579 = pneg %p578
  %581 = shalt.err (%p579)
  %s582 = scalar_lea.sflag [#allocation2], 4
  %583 = vsyncmov %s582
  %s584 = vpop.sfrf %583
  %p585 = scmp.eq.s32.totalorder %s584, 0
  %p586 = pneg %p585
  %588 = shalt.err (%p586)
  %s589 = scalar_lea.sflag [#allocation2], 5
  %590 = vsyncmov %s589
  %s591 = vpop.sfrf %590
  %p592 = scmp.eq.s32.totalorder %s591, 0
  %p593 = pneg %p592
  %595 = shalt.err (%p593)
  %s596 = scalar_lea.sflag [#allocation2], 6
  %597 = vsyncmov %s596
  %s598 = vpop.sfrf %597
  %p599 = scmp.eq.s32.totalorder %s598, 0
  %p600 = pneg %p599
  %602 = shalt.err (%p600)
  %s603 = scalar_lea.sflag [#allocation2], 7
  %604 = vsyncmov %s603
  %s605 = vpop.sfrf %604
  %p606 = scmp.eq.s32.totalorder %s605, 0
  %p607 = pneg %p606
  %609 = shalt.err (%p607)

</llo_original>
